<compile_context>
chip_gen: v7x
topology: tpu7x:2x2x1
jax: 0.10.0
libtpu: 0.0.40
codegen_flags: <defaults>
</compile_context>

<pallas_src>
import jax
import jax.numpy as jnp
from jax.experimental import pallas as pl
from jax.experimental.pallas import tpu as pltpu

LANE = 128  # TPU lane width; hidden dim is padded to a multiple of this.


# ---------------------------------------------------------------------------
# Kernel: one GRU step per grid iteration, hidden state resident in VMEM.
# ---------------------------------------------------------------------------
def gru_encode_kernel(tok_ref,                       # scalar prefetch (SMEM)
                      emb_ref, h0_ref,               # gathered emb row, initial h
                      wih_ref, whh_ref,              # (Hp, 3Hp) gate-stacked weights
                      bi_ref, bhn_ref,               # (1, 3Hp) fused bias, (1, Hp) b_hn
                      out_ref,                       # (1, 1, Hp) per-step output
                      h_scr):                        # (1, Hp) VMEM hidden scratch
    t = pl.program_id(0)
    Hp = h_scr.shape[-1]

    @pl.when(t == 0)
    def _():
        h_scr[...] = h0_ref[...]

    x = emb_ref[0]                                   # (1, Hp) embedded token
    h = h_scr[...]                                   # (1, Hp) previous hidden

    # Two fused gate projections instead of six small matmuls.
    gi = jnp.dot(x, wih_ref[...], preferred_element_type=jnp.float32) + bi_ref[...]
    gh = jnp.dot(h, whh_ref[...], preferred_element_type=jnp.float32)

    # torch.nn.GRU gate order [r, z, n], stacked along lanes in blocks of Hp.
    r = jax.nn.sigmoid(gi[:, 0 * Hp:1 * Hp] + gh[:, 0 * Hp:1 * Hp])
    z = jax.nn.sigmoid(gi[:, 1 * Hp:2 * Hp] + gh[:, 1 * Hp:2 * Hp])
    n = jnp.tanh(gi[:, 2 * Hp:3 * Hp] + r * (gh[:, 2 * Hp:3 * Hp] + bhn_ref[...]))
    h_new = (1.0 - z) * n + z * h                    # padded lanes stay exactly 0

    h_scr[...] = h_new
    out_ref[0] = h_new


def _pallas_encode(tokens, h0_padded, packed):
    """tokens: (T,) int32 (pre-clipped); h0_padded: (1, Hp); returns (T, 1, Hp)."""
    T = tokens.shape[0]
    V, _, Hp = packed["emb"].shape

    return pl.pallas_call(
        gru_encode_kernel,
        out_shape=jax.ShapeDtypeStruct((T, 1, Hp), jnp.float32),
        grid_spec=pltpu.PrefetchScalarGridSpec(
            num_scalar_prefetch=1,
            grid=(T,),
            in_specs=[
                # Embedding: fetch only row tok[t] (data-dependent index_map).
                pl.BlockSpec((1, 1, Hp), lambda t, tok: (tok[t], 0, 0)),
                # Initial hidden + weights/biases: constant index_map -> DMA'd once.
                pl.BlockSpec((1, Hp), lambda t, tok: (0, 0)),
                pl.BlockSpec((Hp, 3 * Hp), lambda t, tok: (0, 0)),
                pl.BlockSpec((Hp, 3 * Hp), lambda t, tok: (0, 0)),
                pl.BlockSpec((1, 3 * Hp), lambda t, tok: (0, 0)),
                pl.BlockSpec((1, Hp), lambda t, tok: (0, 0)),
            ],
            out_specs=pl.BlockSpec((1, 1, Hp), lambda t, tok: (t, 0, 0)),
            scratch_shapes=[pltpu.VMEM((1, Hp), jnp.float32)],
        ),
        compiler_params=pltpu.CompilerParams(
            dimension_semantics=("arbitrary",)),     # sequential recurrence
    )(tokens, packed["emb"], h0_padded, packed["w_ih"], packed["w_hh"],
      packed["b_i"], packed["b_hn"])


# ---------------------------------------------------------------------------
# JIT'ed wrappers (forward == torch Encoder.forward; sequence == recurrence).
# ---------------------------------------------------------------------------
@jax.jit
def _encode_impl(tokens, hidden0, packed):
    """tokens: (T,) int; hidden0: (1,1,H). Returns ((T,H) outputs, final hidden)."""
    H = hidden0.shape[-1]
    V, _, Hp = packed["emb"].shape
    tok = jnp.clip(tokens.astype(jnp.int32), 0, V - 1)      # bounds-safe gather
    h0 = jnp.zeros((1, Hp), jnp.float32).at[:, :H].set(
        hidden0.reshape(1, H).astype(jnp.float32))
    out_p = _pallas_encode(tok, h0, packed)                  # (T, 1, Hp)
    outputs = out_p[:, 0, :H]                                # (T, H)
    h_final = outputs[-1].reshape(1, 1, H)
    return outputs, h_final


def encoder_forward(token, hidden, packed):
    """Single-token step: returns (output (1,1,H), new_hidden (1,1,H))."""
    tok = jnp.asarray(token, jnp.int32).reshape(1)
    outputs, h_final = _encode_impl(tok, hidden, packed)
    return outputs.reshape(1, 1, -1), h_final


# ---------------------------------------------------------------------------
# Params: raw (math layout, for reference check) + packed (kernel layout).
# ---------------------------------------------------------------------------
def init_params(vocab_size, hidden_size, key):
    k_emb, k_wih, k_whh, k_bih, k_bhh = jax.random.split(key, 5)
    bound = 1.0 / jnp.sqrt(jnp.float32(hidden_size))
    # w_*[g] stored so that gate pre-activation = x @ w_*[g] (i.e. torch W^T),
    # gate order [r, z, n] as in torch.nn.GRU.
    return {
        "embedding": jax.random.normal(k_emb, (vocab_size, hidden_size), jnp.float32),
        "w_ih": jax.random.uniform(k_wih, (3, hidden_size, hidden_size),
                                   jnp.float32, -bound, bound),
        "w_hh": jax.random.uniform(k_whh, (3, hidden_size, hidden_size),
                                   jnp.float32, -bound, bound),
        "b_ih": jax.random.uniform(k_bih, (3, hidden_size), jnp.float32, -bound, bound),
        "b_hh": jax.random.uniform(k_bhh, (3, hidden_size), jnp.float32, -bound, bound),
    }


def pack_params(raw, lane=LANE):
    V, H = raw["embedding"].shape
    Hp = ((H + lane - 1) // lane) * lane

    emb_p = jnp.zeros((V, 1, Hp), jnp.float32).at[:, 0, :H].set(raw["embedding"])

    def pack_w(w3):  # (3, H, H) -> (Hp, 3*Hp), gates stacked along lanes
        out = jnp.zeros((Hp, 3 * Hp), jnp.float32)
        for g in range(3):
            out = out.at[:H, g * Hp:g * Hp + H].set(w3[g])
        return out

    # r/z biases of input+hidden pre-summed; n keeps b_ih_n here, b_hh_n separate.
    b_i = jnp.zeros((1, 3 * Hp), jnp.float32)
    b_i = b_i.at[0, 0 * Hp:0 * Hp + H].set(raw["b_ih"][0] + raw["b_hh"][0])
    b_i = b_i.at[0, 1 * Hp:1 * Hp + H].set(raw["b_ih"][1] + raw["b_hh"][1])
    b_i = b_i.at[0, 2 * Hp:2 * Hp + H].set(raw["b_ih"][2])
    b_hn = jnp.zeros((1, Hp), jnp.float32).at[0, :H].set(raw["b_hh"][2])

    return {"emb": emb_p, "w_ih": pack_w(raw["w_ih"]), "w_hh": pack_w(raw["w_hh"]),
            "b_i": b_i, "b_hn": b_hn}


# ---------------------------------------------------------------------------
# Pure-JAX reference (same math as torch.nn.GRU single step).
# ---------------------------------------------------------------------------
def _gru_step_ref(x, h, raw):
    w_ih, w_hh, b_ih, b_hh = raw["w_ih"], raw["w_hh"], raw["b_ih"], raw["b_hh"]
    i_r = x @ w_ih[0] + b_ih[0]
    i_z = x @ w_ih[1] + b_ih[1]
    i_n = x @ w_ih[2] + b_ih[2]
    h_r = h @ w_hh[0] + b_hh[0]
    h_z = h @ w_hh[1] + b_hh[1]
    h_n = h @ w_hh[2] + b_hh[2]
    r = jax.nn.sigmoid(i_r + h_r)
    z = jax.nn.sigmoid(i_z + h_z)
    n = jnp.tanh(i_n + r * h_n)
    return (1.0 - z) * n + z * h


if __name__ == "__main__":
    VOCAB, HIDDEN = 16, 32

    key = jax.random.PRNGKey(0)
    k_params, k_hidden = jax.random.split(key)
    raw = init_params(VOCAB, HIDDEN, k_params)
    packed = pack_params(raw)

    # --- Single-step forward (matches Encoder.forward) ---
    token = 5
    hidden = jax.random.normal(k_hidden, (1, 1, HIDDEN), jnp.float32)
    output, new_hidden = encoder_forward(token, hidden, packed)
    output, new_hidden = jax.block_until_ready((output, new_hidden))

    x_ref = raw["embedding"][token][None, :]
    h_ref = _gru_step_ref(x_ref, hidden.reshape(1, HIDDEN), raw)
    assert output.shape == (1, 1, HIDDEN) and new_hidden.shape == (1, 1, HIDDEN)
    assert jnp.allclose(output.reshape(1, HIDDEN), h_ref, atol=1e-4), "step output mismatch"
    assert jnp.allclose(new_hidden.reshape(1, HIDDEN), h_ref, atol=1e-4), "step hidden mismatch"

    # --- Whole-sequence encode: one pallas_call for T tokens (recurrence in-kernel) ---
    seq = jnp.array([3, 1, 4, 1, 5, 9, 2, 6], jnp.int32)
    outs, h_final = jax.block_until_ready(
        _encode_impl(seq, jnp.zeros((1, 1, HIDDEN), jnp.float32), packed))
    h = jnp.zeros((1, HIDDEN), jnp.float32)
    for i in range(seq.shape[0]):
        h = _gru_step_ref(raw["embedding"][seq[i]][None, :], h, raw)
        assert jnp.allclose(outs[i], h[0], atol=1e-4), f"sequence mismatch at step {i}"
    assert jnp.allclose(h_final.reshape(1, HIDDEN), h, atol=1e-4)

    print("KERNEL_OK")
</pallas_src>

<mosaic_0001>
module attributes {stable_mosaic.version = 11 : i64} {
  func.func @gru_encode_kernel(%arg0: i32, %arg1: memref<1xi32, #tpu.memory_space<smem>>, %arg2: memref<1x1x128xf32, #tpu.memory_space<vmem>>, %arg3: memref<1x128xf32, #tpu.memory_space<vmem>>, %arg4: memref<128x384xf32, #tpu.memory_space<vmem>>, %arg5: memref<128x384xf32, #tpu.memory_space<vmem>>, %arg6: memref<1x384xf32, #tpu.memory_space<vmem>>, %arg7: memref<1x128xf32, #tpu.memory_space<vmem>>, %arg8: memref<1x1x128xf32, #tpu.memory_space<vmem>>, %arg9: memref<1x128xf32, #tpu.memory_space<vmem>>) attributes {dimension_semantics = [#tpu.dimension_semantics<arbitrary>], iteration_bounds = array<i64: 1>, scalar_prefetch = 1 : i64, scratch_operands = 1 : i64, tpu.core_type = #tpu.core_type<tc>, window_params = [{transform_indices = @transform_0, window_bounds = array<i64: 1, 1, 128>}, {pipeline_mode = #tpu.pipeline_mode<synchronous>, transform_indices = @transform_1, window_bounds = array<i64: 1, 128>}, {pipeline_mode = #tpu.pipeline_mode<synchronous>, transform_indices = @transform_2, window_bounds = array<i64: 128, 384>}, {pipeline_mode = #tpu.pipeline_mode<synchronous>, transform_indices = @transform_3, window_bounds = array<i64: 128, 384>}, {pipeline_mode = #tpu.pipeline_mode<synchronous>, transform_indices = @transform_4, window_bounds = array<i64: 1, 384>}, {pipeline_mode = #tpu.pipeline_mode<synchronous>, transform_indices = @transform_5, window_bounds = array<i64: 1, 128>}, {transform_indices = @transform_6, window_bounds = array<i64: 1, 1, 128>}]} {
    %c0_i32 = arith.constant 0 : i32
    %0 = arith.cmpi eq, %arg0, %c0_i32 : i32
    %1 = arith.extui %0 : i1 to i32
    %c0_i32_0 = arith.constant 0 : i32
    %2 = arith.cmpi ne, %1, %c0_i32_0 : i32
    scf.if %2 {
      %c0_22 = arith.constant 0 : index
      %c0_23 = arith.constant 0 : index
      %44 = vector.load %arg3[%c0_22, %c0_23] : memref<1x128xf32, #tpu.memory_space<vmem>>, vector<1x128xf32>
      %c0_24 = arith.constant 0 : index
      %c0_25 = arith.constant 0 : index
      %45 = vector.load %arg9[%c0_24, %c0_25] : memref<1x128xf32, #tpu.memory_space<vmem>>, vector<1x128xf32>
      tpu.vector_store %arg9[%c0_24, %c0_25], %44 {strides = array<i32>} : memref<1x128xf32, #tpu.memory_space<vmem>>, vector<1x128xf32>,
    } else {
    }
    %c0 = arith.constant 0 : index
    %c0_1 = arith.constant 0 : index
    %c0_2 = arith.constant 0 : index
    %3 = vector.load %arg2[%c0, %c0_1, %c0_2] : memref<1x1x128xf32, #tpu.memory_space<vmem>>, vector<1x1x128xf32>
    %4 = vector.shape_cast %3 : vector<1x1x128xf32> to vector<1x128xf32>
    %c0_3 = arith.constant 0 : index
    %c0_4 = arith.constant 0 : index
    %5 = vector.load %arg9[%c0_3, %c0_4] : memref<1x128xf32, #tpu.memory_space<vmem>>, vector<1x128xf32>
    %c0_5 = arith.constant 0 : index
    %c0_6 = arith.constant 0 : index
    %6 = vector.load %arg4[%c0_5, %c0_6] : memref<128x384xf32, #tpu.memory_space<vmem>>, vector<128x384xf32>
    %cst = arith.constant dense<0.000000e+00> : vector<1x384xf32>
    %7 = tpu.matmul %4, %6, %cst {dimension_numbers = #tpu.dot_dimension_numbers<[1], [0], [0], [1], [0, 0, 1, 1], [], []>} : vector<1x128xf32>, vector<128x384xf32>, vector<1x384xf32> -> vector<1x384xf32>
    %c0_7 = arith.constant 0 : index
    %c0_8 = arith.constant 0 : index
    %8 = vector.load %arg6[%c0_7, %c0_8] : memref<1x384xf32, #tpu.memory_space<vmem>>, vector<1x384xf32>
    %9 = arith.addf %7, %8 : vector<1x384xf32>
    %c0_9 = arith.constant 0 : index
    %c0_10 = arith.constant 0 : index
    %10 = vector.load %arg5[%c0_9, %c0_10] : memref<128x384xf32, #tpu.memory_space<vmem>>, vector<128x384xf32>
    %cst_11 = arith.constant dense<0.000000e+00> : vector<1x384xf32>
    %11 = tpu.matmul %5, %10, %cst_11 {dimension_numbers = #tpu.dot_dimension_numbers<[1], [0], [0], [1], [0, 0, 1, 1], [], []>} : vector<1x128xf32>, vector<128x384xf32>, vector<1x384xf32> -> vector<1x384xf32>
    %12 = vector.extract_strided_slice %9 {offsets = [0, 0], sizes = [1, 128], strides = [1, 1]} : vector<1x384xf32> to vector<1x128xf32>
    %13 = vector.extract_strided_slice %11 {offsets = [0, 0], sizes = [1, 128], strides = [1, 1]} : vector<1x384xf32> to vector<1x128xf32>
    %14 = arith.addf %12, %13 : vector<1x128xf32>
    %15 = arith.negf %14 : vector<1x128xf32>
    %16 = math.exp %15 : vector<1x128xf32>
    %cst_12 = arith.constant 1.000000e+00 : f32
    %17 = vector.broadcast %cst_12 : f32 to vector<1x128xf32>
    %18 = arith.addf %17, %16 : vector<1x128xf32>
    %19 = arith.divf %17, %18 : vector<1x128xf32>
    %20 = vector.extract_strided_slice %9 {offsets = [0, 128], sizes = [1, 128], strides = [1, 1]} : vector<1x384xf32> to vector<1x128xf32>
    %21 = vector.extract_strided_slice %11 {offsets = [0, 128], sizes = [1, 128], strides = [1, 1]} : vector<1x384xf32> to vector<1x128xf32>
    %22 = arith.addf %20, %21 : vector<1x128xf32>
    %23 = arith.negf %22 : vector<1x128xf32>
    %24 = math.exp %23 : vector<1x128xf32>
    %cst_13 = arith.constant 1.000000e+00 : f32
    %25 = vector.broadcast %cst_13 : f32 to vector<1x128xf32>
    %26 = arith.addf %25, %24 : vector<1x128xf32>
    %27 = arith.divf %25, %26 : vector<1x128xf32>
    %28 = vector.extract_strided_slice %9 {offsets = [0, 256], sizes = [1, 128], strides = [1, 1]} : vector<1x384xf32> to vector<1x128xf32>
    %29 = vector.extract_strided_slice %11 {offsets = [0, 256], sizes = [1, 128], strides = [1, 1]} : vector<1x384xf32> to vector<1x128xf32>
    %c0_14 = arith.constant 0 : index
    %c0_15 = arith.constant 0 : index
    %30 = vector.load %arg7[%c0_14, %c0_15] : memref<1x128xf32, #tpu.memory_space<vmem>>, vector<1x128xf32>
    %31 = arith.addf %29, %30 : vector<1x128xf32>
    %32 = arith.mulf %19, %31 : vector<1x128xf32>
    %33 = arith.addf %28, %32 : vector<1x128xf32>
    %34 = math.tanh %33 : vector<1x128xf32>
    %cst_16 = arith.constant 1.000000e+00 : f32
    %35 = vector.broadcast %cst_16 : f32 to vector<1x128xf32>
    %36 = arith.subf %35, %27 : vector<1x128xf32>
    %37 = arith.mulf %36, %34 : vector<1x128xf32>
    %38 = arith.mulf %27, %5 : vector<1x128xf32>
    %39 = arith.addf %37, %38 : vector<1x128xf32>
    %c0_17 = arith.constant 0 : index
    %c0_18 = arith.constant 0 : index
    %40 = vector.load %arg9[%c0_17, %c0_18] : memref<1x128xf32, #tpu.memory_space<vmem>>, vector<1x128xf32>
    tpu.vector_store %arg9[%c0_17, %c0_18], %39 {strides = array<i32>} : memref<1x128xf32, #tpu.memory_space<vmem>>, vector<1x128xf32>,
    %c0_19 = arith.constant 0 : index
    %c0_20 = arith.constant 0 : index
    %c0_21 = arith.constant 0 : index
    %41 = vector.load %arg8[%c0_19, %c0_20, %c0_21] : memref<1x1x128xf32, #tpu.memory_space<vmem>>, vector<1x1x128xf32>
    %42 = vector.shape_cast %41 : vector<1x1x128xf32> to vector<1x128xf32>
    %43 = vector.shape_cast %39 : vector<1x128xf32> to vector<1x1x128xf32>
    tpu.vector_store %arg8[%c0_19, %c0_20, %c0_21], %43 {strides = array<i32>} : memref<1x1x128xf32, #tpu.memory_space<vmem>>, vector<1x1x128xf32>,
    return
  }
  func.func @transform_0(%arg0: i32, %arg1: memref<1xi32, #tpu.memory_space<smem>>) -> (i32, i32, i32) {
    %0 = arith.index_cast %arg0 : i32 to index
    %1 = memref.load %arg1[%0] : memref<1xi32, #tpu.memory_space<smem>>
    %c0_i32 = arith.constant 0 : i32
    %c0_i32_0 = arith.constant 0 : i32
    %c0_i32_1 = arith.constant 0 : i32
    return %1, %c0_i32, %c0_i32_0 : i32, i32, i32
  }
  func.func @transform_1(%arg0: i32, %arg1: memref<1xi32, #tpu.memory_space<smem>>) -> (i32, i32) {
    %c0_i32 = arith.constant 0 : i32
    %c0_i32_0 = arith.constant 0 : i32
    %c0_i32_1 = arith.constant 0 : i32
    return %c0_i32, %c0_i32_0 : i32, i32
  }
  func.func @transform_2(%arg0: i32, %arg1: memref<1xi32, #tpu.memory_space<smem>>) -> (i32, i32) {
    %c0_i32 = arith.constant 0 : i32
    %c0_i32_0 = arith.constant 0 : i32
    %c0_i32_1 = arith.constant 0 : i32
    return %c0_i32, %c0_i32_0 : i32, i32
  }
  func.func @transform_3(%arg0: i32, %arg1: memref<1xi32, #tpu.memory_space<smem>>) -> (i32, i32) {
    %c0_i32 = arith.constant 0 : i32
    %c0_i32_0 = arith.constant 0 : i32
    %c0_i32_1 = arith.constant 0 : i32
    return %c0_i32, %c0_i32_0 : i32, i32
  }
  func.func @transform_4(%arg0: i32, %arg1: memref<1xi32, #tpu.memory_space<smem>>) -> (i32, i32) {
    %c0_i32 = arith.constant 0 : i32
    %c0_i32_0 = arith.constant 0 : i32
    %c0_i32_1 = arith.constant 0 : i32
    return %c0_i32, %c0_i32_0 : i32, i32
  }
  func.func @transform_5(%arg0: i32, %arg1: memref<1xi32, #tpu.memory_space<smem>>) -> (i32, i32) {
    %c0_i32 = arith.constant 0 : i32
    %c0_i32_0 = arith.constant 0 : i32
    %c0_i32_1 = arith.constant 0 : i32
    return %c0_i32, %c0_i32_0 : i32, i32
  }
  func.func @transform_6(%arg0: i32, %arg1: memref<1xi32, #tpu.memory_space<smem>>) -> (i32, i32, i32) {
    %c0_i32 = arith.constant 0 : i32
    %c0_i32_0 = arith.constant 0 : i32
    %c0_i32_1 = arith.constant 0 : i32
    return %arg0, %c0_i32, %c0_i32_0 : i32, i32, i32
  }
}

</mosaic_0001>

<llo_original>
// kernel: _encode_impl.1
$region0: #{_encode_impl.1}
  #allocation0 [shape = 'u32[]', space=smem, size = 0x4, offset = 0x4, fixed_abs, tag = 'smem constant byte address 0x4 - core index']
  #allocation1 [shape = 'u32[144,128]{1,0:T(1,128)}', space=vmem, size = 0x12000, scoped, tag = 'internal scratch']
  #allocation2 [shape = 'f32[1,128]{1,0:T(1,128)}', space=vmem, size = 0x200, scoped, tag = 'scratch operand']
  #allocation3 [shape = 's32[1]{0}', space=sflag, size = 0x4, scoped, tag = 'scoped memory for _encode_impl.1']
  #allocation4 [shape = 's32[1]{0:T(128)S(6)}', space=smem, size = 0x200, scoped, tag = 'prefetched SMEM operand 0']
  %s0 = inlined_call_operand.<no memory space> [shape: s32[1], index: 0, kind: input, shape index: {}]
  %s1 = inlined_call_operand.vmem [shape: f32[16,1,128], index: 1, kind: input, shape index: {}]
  %s2 = inlined_call_operand.vmem [shape: f32[1,128], index: 2, kind: input, shape index: {}]
  %s3 = inlined_call_operand.hbm [shape: f32[128,384], index: 3, kind: input, shape index: {}]
  %s4 = inlined_call_operand.hbm [shape: f32[128,384], index: 4, kind: input, shape index: {}]
  %s5 = inlined_call_operand.vmem [shape: f32[1,384], index: 5, kind: input, shape index: {}]
  %s6 = inlined_call_operand.vmem [shape: f32[1,128], index: 6, kind: input, shape index: {}]
  %s7 = inlined_call_operand.vmem [shape: f32[1,1,128], index: 7, kind: output, shape index: {}]
  %s8 = sld [smem:[#allocation0]]
  $region46: #{_encode_impl.1} parent=0
    _
  %s10 = ssub.s32 1, %s8
  %s11 = scalar_select 0, %s10, %s8
  %12 = sst [smem:[#allocation4]] %s0
  $region1: #{_encode_impl.1} parent=0
    #allocation5 [shape = 'u8[196608]{0}', space=vmem, size = 0x30000, scoped, tag = 'input window, operand 3, single buffered']
    #allocation6 [shape = 's32[1]{0}', space=sflag, size = 0x4, scoped, tag = 'scoped memory for _encode_impl.1']
    #allocation7 [shape = 'u8[196608]{0}', space=vmem, size = 0x30000, scoped, tag = 'input window, operand 4, single buffered']
    #allocation8 [shape = 's32[1]{0}', space=sflag, size = 0x4, scoped, tag = 'scoped memory for _encode_impl.1']
    %13 = vsyncpa [#allocation6], 0
    %14 = vsyncpa [#allocation8], 0
    // Predicated region
    $region2: #{_encode_impl.1} parent=1 // pred_check
      _
    $region3: #{_encode_impl.1} parent=1 // pred_check_branch
      %16 = sbr.rel (0) target = $region5
    $region4: #{_encode_impl.1} parent=1 // pred_region
      %s17 = sld [smem:[#allocation4]]
      %p18 = scmp.lt.s32.totalorder %s17, 15
      %s19 = scalar_select %p18, %s17, 15
      %s20 = scalar_lea.vmem %s1, %s19
      %s21 = sld [smem:[#allocation4]]
    $region5: #{_encode_impl.1} parent=1 // pred_fallthru
      _
    // Predicated region
    $region6: #{_encode_impl.1} parent=1 // pred_check
      _
    $region7: #{_encode_impl.1} parent=1 // pred_check_branch
      %23 = sbr.rel (0) target = $region9
    $region8: #{_encode_impl.1} parent=1 // pred_region
      _
    $region9: #{_encode_impl.1} parent=1 // pred_fallthru
      _
    // Predicated region
    $region10: #{_encode_impl.1} parent=1 // pred_check
      _
    $region11: #{_encode_impl.1} parent=1 // pred_check_branch
      %25 = sbr.rel (0) target = $region13
    $region12: #{_encode_impl.1} parent=1 // pred_region
      %s27 = ssub.s32 6144, 6144
      %28 = vsyncadd [#allocation6], %s27
      %s29 = sshll.u32 [#allocation5], 4
      %s30 = int_to_ptr.vmem [resolvable:$true] %s29
      %35 = dma.hbm_to_vmem [thread:$0]  %s3, 6144, %s30, [#allocation6], 384, 384, 24
    $region13: #{_encode_impl.1} parent=1 // pred_fallthru
      _
    // Predicated region
    $region14: #{_encode_impl.1} parent=1 // pred_check
      _
    $region15: #{_encode_impl.1} parent=1 // pred_check_branch
      %37 = sbr.rel (0) target = $region17
    $region16: #{_encode_impl.1} parent=1 // pred_region
      %s39 = ssub.s32 6144, 6144
      %40 = vsyncadd [#allocation8], %s39
      %s41 = sshll.u32 [#allocation7], 4
      %s42 = int_to_ptr.vmem [resolvable:$true] %s41
      %47 = dma.hbm_to_vmem [thread:$0]  %s4, 6144, %s42, [#allocation8], 384, 384, 24
    $region17: #{_encode_impl.1} parent=1 // pred_fallthru
      _
    // Predicated region
    $region18: #{_encode_impl.1} parent=1 // pred_check
      _
    $region19: #{_encode_impl.1} parent=1 // pred_check_branch
      %49 = sbr.rel (0) target = $region21
    $region20: #{_encode_impl.1} parent=1 // pred_region
      _
    $region21: #{_encode_impl.1} parent=1 // pred_fallthru
      _
    // Predicated region
    $region22: #{_encode_impl.1} parent=1 // pred_check
      _
    $region23: #{_encode_impl.1} parent=1 // pred_check_branch
      %51 = sbr.rel (0) target = $region25
    $region24: #{_encode_impl.1} parent=1 // pred_region
      _
    $region25: #{_encode_impl.1} parent=1 // pred_fallthru
      _
    // Predicated region
    $region26: #{_encode_impl.1} parent=1 // pred_check
      _
    $region27: #{_encode_impl.1} parent=1 // pred_check_branch
      %53 = sbr.rel (0) target = $region29
    $region28: #{_encode_impl.1} parent=1 // pred_region
      %54 = dma.done [#allocation6], 6144
    $region29: #{_encode_impl.1} parent=1 // pred_fallthru
      _
    // Predicated region
    $region30: #{_encode_impl.1} parent=1 // pred_check
      _
    $region31: #{_encode_impl.1} parent=1 // pred_check_branch
      %56 = sbr.rel (0) target = $region33
    $region32: #{_encode_impl.1} parent=1 // pred_region
      %57 = dma.done [#allocation8], 6144
    $region33: #{_encode_impl.1} parent=1 // pred_fallthru
      _
    %s58 = sld [smem:[#allocation4]]
    %p59 = scmp.lt.s32.totalorder %s58, 15
    %s60 = scalar_select %p59, %s58, 15
    %s61 = scalar_lea.vmem %s1, %s60
    %s62 = sld [smem:[#allocation4]]
    %p63 = scmp.lt.s32.totalorder %s62, 15
    %s64 = scalar_select %p63, %s62, 15
    %s65 = scalar_lea.vmem %s1, %s64
    %s66 = sld [smem:[#allocation4]]
    %p67 = scmp.eq.s32.totalorder 0, 0
    // Predicated region
    $region34: #{_encode_impl.1} parent=1 // pred_check
      %p68 = pneg %p67
    $region35: #{_encode_impl.1} parent=1 // pred_check_branch
      %70 = sbr.rel (%p68) target = $region37
    $region36: #{_encode_impl.1} parent=1 // pred_region
      %v71 = vld [vmem:[%s2] sm:$0x1]
      %72 = vst [vmem:[#allocation2] sm:$0x1] %v71
    $region37: #{_encode_impl.1} parent=1 // pred_fallthru
      _
    %v73 = vld [vmem:[%s65] sm:$0x1]
    %v74 = vld [vmem:[#allocation2] sm:$0x1]
    %v75 = vld [vmem:[#allocation5] sm:$0xff]
    %v76 = vld [vmem:[#allocation5 + $0x8] sm:$0xff]
    %v77 = vld [vmem:[#allocation5 + $0x10] sm:$0xff]
    %v78 = vld [vmem:[#allocation5 + $0x18] sm:$0xff]
    %v79 = vld [vmem:[#allocation5 + $0x20] sm:$0xff]
    %v80 = vld [vmem:[#allocation5 + $0x28] sm:$0xff]
    %v81 = vld [vmem:[#allocation5 + $0x30] sm:$0xff]
    %v82 = vld [vmem:[#allocation5 + $0x38] sm:$0xff]
    %v83 = vld [vmem:[#allocation5 + $0x40] sm:$0xff]
    %v84 = vld [vmem:[#allocation5 + $0x48] sm:$0xff]
    %v85 = vld [vmem:[#allocation5 + $0x50] sm:$0xff]
    %v86 = vld [vmem:[#allocation5 + $0x58] sm:$0xff]
    %v87 = vld [vmem:[#allocation5 + $0x60] sm:$0xff]
    %v88 = vld [vmem:[#allocation5 + $0x68] sm:$0xff]
    %v89 = vld [vmem:[#allocation5 + $0x70] sm:$0xff]
    %v90 = vld [vmem:[#allocation5 + $0x78] sm:$0xff]
    %v91 = vld [vmem:[#allocation5 + $0x80] sm:$0xff]
    %v92 = vld [vmem:[#allocation5 + $0x88] sm:$0xff]
    %v93 = vld [vmem:[#allocation5 + $0x90] sm:$0xff]
    %v94 = vld [vmem:[#allocation5 + $0x98] sm:$0xff]
    %v95 = vld [vmem:[#allocation5 + $0xa0] sm:$0xff]
    %v96 = vld [vmem:[#allocation5 + $0xa8] sm:$0xff]
    %v97 = vld [vmem:[#allocation5 + $0xb0] sm:$0xff]
    %v98 = vld [vmem:[#allocation5 + $0xb8] sm:$0xff]
    %v99 = vld [vmem:[#allocation5 + $0xc0] sm:$0xff]
    %v100 = vld [vmem:[#allocation5 + $0xc8] sm:$0xff]
    %v101 = vld [vmem:[#allocation5 + $0xd0] sm:$0xff]
    %v102 = vld [vmem:[#allocation5 + $0xd8] sm:$0xff]
    %v103 = vld [vmem:[#allocation5 + $0xe0] sm:$0xff]
    %v104 = vld [vmem:[#allocation5 + $0xe8] sm:$0xff]
    %v105 = vld [vmem:[#allocation5 + $0xf0] sm:$0xff]
    %v106 = vld [vmem:[#allocation5 + $0xf8] sm:$0xff]
    %v107 = vld [vmem:[#allocation5 + $0x100] sm:$0xff]
    %v108 = vld [vmem:[#allocation5 + $0x108] sm:$0xff]
    %v109 = vld [vmem:[#allocation5 + $0x110] sm:$0xff]
    %v110 = vld [vmem:[#allocation5 + $0x118] sm:$0xff]
    %v111 = vld [vmem:[#allocation5 + $0x120] sm:$0xff]
    %v112 = vld [vmem:[#allocation5 + $0x128] sm:$0xff]
    %v113 = vld [vmem:[#allocation5 + $0x130] sm:$0xff]
    %v114 = vld [vmem:[#allocation5 + $0x138] sm:$0xff]
    %v115 = vld [vmem:[#allocation5 + $0x140] sm:$0xff]
    %v116 = vld [vmem:[#allocation5 + $0x148] sm:$0xff]
    %v117 = vld [vmem:[#allocation5 + $0x150] sm:$0xff]
    %v118 = vld [vmem:[#allocation5 + $0x158] sm:$0xff]
    %v119 = vld [vmem:[#allocation5 + $0x160] sm:$0xff]
    %v120 = vld [vmem:[#allocation5 + $0x168] sm:$0xff]
    %v121 = vld [vmem:[#allocation5 + $0x170] sm:$0xff]
    %v122 = vld [vmem:[#allocation5 + $0x178] sm:$0xff]
    %v123 = vld [vmem:[%s5] sm:$0x7]
    %v125 = vlaneseq
    %v126 = vshrl.u32 %v125, 7
    %v127 = vsub.s32 0, %v126
    %v128 = vrot.slane %v123, %v127
    %v129 = vlaneseq
    %v130 = vshrl.u32 %v129, 7
    %v131 = vsub.s32 1, %v130
    %v132 = vrot.slane %v123, %v131
    %v133 = vlaneseq
    %v134 = vshrl.u32 %v133, 7
    %v135 = vsub.s32 2, %v134
    %v136 = vrot.slane %v123, %v135
    %140 = vmatprep.subr.mxu0 %v76
    %141 = vmatpush1.msra.mxu0 %v75
    %142 = vmatprep.subr.mxu0 %v79
    %143 = vmatpush1.msra.mxu0 %v78
    %144 = vmatprep.subr.mxu0 %v82
    %145 = vmatpush1.msra.mxu0 %v81
    %146 = vmatprep.subr.mxu0 %v85
    %147 = vmatpush1.msra.mxu0 %v84
    %148 = vmatprep.subr.mxu0 %v88
    %149 = vmatpush1.msra.mxu0 %v87
    %150 = vmatprep.subr.mxu0 %v91
    %151 = vmatpush1.msra.mxu0 %v90
    %152 = vmatprep.subr.mxu0 %v94
    %153 = vmatpush1.msra.mxu0 %v93
    %154 = vmatprep.subr.mxu0 %v97
    %155 = vmatpush1.msra.mxu0 %v96
    %156 = vmatprep.subr.mxu0 %v100
    %157 = vmatpush1.msra.mxu0 %v99
    %158 = vmatprep.subr.mxu0 %v103
    %159 = vmatpush1.msra.mxu0 %v102
    %160 = vmatprep.subr.mxu0 %v106
    %161 = vmatpush1.msra.mxu0 %v105
    %162 = vmatprep.subr.mxu0 %v109
    %163 = vmatpush1.msra.mxu0 %v108
    %164 = vmatprep.subr.mxu0 %v112
    %165 = vmatpush1.msra.mxu0 %v111
    %166 = vmatprep.subr.mxu0 %v115
    %167 = vmatpush1.msra.mxu0 %v114
    %168 = vmatprep.subr.mxu0 %v118
    %169 = vmatpush1.msra.mxu0 %v117
    %170 = vmatprep.subr.mxu0 %v121
    %171 = vmatpush1.msra.mxu0 %v120
    %172 = vmatprep.subr.mxu0 0.0
    %173 = vmatpush1.msra.mxu0 0.0
    %174 = vmatprep.subr.mxu0 0.0
    %175 = vmatpush1.msra.mxu0 0.0
    %176 = vmatprep.subr.mxu0 0.0
    %177 = vmatpush1.msra.mxu0 0.0
    %178 = vmatprep.subr.mxu0 0.0
    %179 = vmatpush1.msra.mxu0 0.0
    %180 = vmatprep.subr.mxu0 0.0
    %181 = vmatpush1.msra.mxu0 0.0
    %182 = vmatprep.subr.mxu0 0.0
    %183 = vmatpush1.msra.mxu0 0.0
    %184 = vmatprep.subr.mxu0 0.0
    %185 = vmatpush1.msra.mxu0 0.0
    %186 = vmatprep.subr.mxu0 0.0
    %187 = vmatpush1.msra.mxu0 0.0
    %188 = vmatprep.subr.mxu0 0.0
    %189 = vmatpush1.msra.mxu0 0.0
    %190 = vmatprep.subr.mxu0 0.0
    %191 = vmatpush1.msra.mxu0 0.0
    %192 = vmatprep.subr.mxu0 0.0
    %193 = vmatpush1.msra.mxu0 0.0
    %194 = vmatprep.subr.mxu0 0.0
    %195 = vmatpush1.msra.mxu0 0.0
    %196 = vmatprep.subr.mxu0 0.0
    %197 = vmatpush1.msra.mxu0 0.0
    %198 = vmatprep.subr.mxu0 0.0
    %199 = vmatpush1.msra.mxu0 0.0
    %200 = vmatprep.subr.mxu0 0.0
    %201 = vmatpush1.msra.mxu0 0.0
    %202 = vmatprep.subr.mxu0 0.0
    %203 = vmatpush1.msra.mxu0 0.0
    %204 = vmatprep.mubr.f32.mxu0 0.0
    %205 = vmatmul.mubr.f32.gmra.mrb[0].mxu0 %v73
    %v206 = vpop.f32.mrb[0].mxu0
    %v207 = vadd.f32 %v128, %v206
    %v208 = vpop.f32.mrb[0].mxu0
    %v209 = vadd.f32 %v132, %v208
    %210 = vdwg.mxu0
    %211 = vmatprep.subr.mxu0 0.0
    %212 = vmatpush1.msra.mxu0 %v77
    %213 = vmatprep.subr.mxu0 0.0
    %214 = vmatpush1.msra.mxu0 %v80
    %215 = vmatprep.subr.mxu0 0.0
    %216 = vmatpush1.msra.mxu0 %v83
    %217 = vmatprep.subr.mxu0 0.0
    %218 = vmatpush1.msra.mxu0 %v86
    %219 = vmatprep.subr.mxu0 0.0
    %220 = vmatpush1.msra.mxu0 %v89
    %221 = vmatprep.subr.mxu0 0.0
    %222 = vmatpush1.msra.mxu0 %v92
    %223 = vmatprep.subr.mxu0 0.0
    %224 = vmatpush1.msra.mxu0 %v95
    %225 = vmatprep.subr.mxu0 0.0
    %226 = vmatpush1.msra.mxu0 %v98
    %227 = vmatprep.subr.mxu0 0.0
    %228 = vmatpush1.msra.mxu0 %v101
    %229 = vmatprep.subr.mxu0 0.0
    %230 = vmatpush1.msra.mxu0 %v104
    %231 = vmatprep.subr.mxu0 0.0
    %232 = vmatpush1.msra.mxu0 %v107
    %233 = vmatprep.subr.mxu0 0.0
    %234 = vmatpush1.msra.mxu0 %v110
    %235 = vmatprep.subr.mxu0 0.0
    %236 = vmatpush1.msra.mxu0 %v113
    %237 = vmatprep.subr.mxu0 0.0
    %238 = vmatpush1.msra.mxu0 %v116
    %239 = vmatprep.subr.mxu0 0.0
    %240 = vmatpush1.msra.mxu0 %v119
    %241 = vmatprep.subr.mxu0 0.0
    %242 = vmatpush1.msra.mxu0 %v122
    %243 = vmatprep.subr.mxu0 0.0
    %244 = vmatpush1.msra.mxu0 0.0
    %245 = vmatprep.subr.mxu0 0.0
    %246 = vmatpush1.msra.mxu0 0.0
    %247 = vmatprep.subr.mxu0 0.0
    %248 = vmatpush1.msra.mxu0 0.0
    %249 = vmatprep.subr.mxu0 0.0
    %250 = vmatpush1.msra.mxu0 0.0
    %251 = vmatprep.subr.mxu0 0.0
    %252 = vmatpush1.msra.mxu0 0.0
    %253 = vmatprep.subr.mxu0 0.0
    %254 = vmatpush1.msra.mxu0 0.0
    %255 = vmatprep.subr.mxu0 0.0
    %256 = vmatpush1.msra.mxu0 0.0
    %257 = vmatprep.subr.mxu0 0.0
    %258 = vmatpush1.msra.mxu0 0.0
    %259 = vmatprep.subr.mxu0 0.0
    %260 = vmatpush1.msra.mxu0 0.0
    %261 = vmatprep.subr.mxu0 0.0
    %262 = vmatpush1.msra.mxu0 0.0
    %263 = vmatprep.subr.mxu0 0.0
    %264 = vmatpush1.msra.mxu0 0.0
    %265 = vmatprep.subr.mxu0 0.0
    %266 = vmatpush1.msra.mxu0 0.0
    %267 = vmatprep.subr.mxu0 0.0
    %268 = vmatpush1.msra.mxu0 0.0
    %269 = vmatprep.subr.mxu0 0.0
    %270 = vmatpush1.msra.mxu0 0.0
    %271 = vmatprep.subr.mxu0 0.0
    %272 = vmatpush1.msra.mxu0 0.0
    %273 = vmatprep.subr.mxu0 0.0
    %274 = vmatpush1.msra.mxu0 0.0
    %275 = vmatprep.mubr.f32.mxu0 0.0
    %276 = vmatmul.mubr.f32.gmra.mrb[0].mxu0 %v73
    %v277 = vpop.f32.mrb[0].mxu0
    %v278 = vadd.f32 %v136, %v277
    %v279 = vpop.f32.mrb[0].mxu0
    %280 = vdwg.mxu0
    %v281 = vld [vmem:[#allocation7] sm:$0xff]
    %v282 = vld [vmem:[#allocation7 + $0x8] sm:$0xff]
    %v283 = vld [vmem:[#allocation7 + $0x10] sm:$0xff]
    %v284 = vld [vmem:[#allocation7 + $0x18] sm:$0xff]
    %v285 = vld [vmem:[#allocation7 + $0x20] sm:$0xff]
    %v286 = vld [vmem:[#allocation7 + $0x28] sm:$0xff]
    %v287 = vld [vmem:[#allocation7 + $0x30] sm:$0xff]
    %v288 = vld [vmem:[#allocation7 + $0x38] sm:$0xff]
    %v289 = vld [vmem:[#allocation7 + $0x40] sm:$0xff]
    %v290 = vld [vmem:[#allocation7 + $0x48] sm:$0xff]
    %v291 = vld [vmem:[#allocation7 + $0x50] sm:$0xff]
    %v292 = vld [vmem:[#allocation7 + $0x58] sm:$0xff]
    %v293 = vld [vmem:[#allocation7 + $0x60] sm:$0xff]
    %v294 = vld [vmem:[#allocation7 + $0x68] sm:$0xff]
    %v295 = vld [vmem:[#allocation7 + $0x70] sm:$0xff]
    %v296 = vld [vmem:[#allocation7 + $0x78] sm:$0xff]
    %v297 = vld [vmem:[#allocation7 + $0x80] sm:$0xff]
    %v298 = vld [vmem:[#allocation7 + $0x88] sm:$0xff]
    %v299 = vld [vmem:[#allocation7 + $0x90] sm:$0xff]
    %v300 = vld [vmem:[#allocation7 + $0x98] sm:$0xff]
    %v301 = vld [vmem:[#allocation7 + $0xa0] sm:$0xff]
    %v302 = vld [vmem:[#allocation7 + $0xa8] sm:$0xff]
    %v303 = vld [vmem:[#allocation7 + $0xb0] sm:$0xff]
    %v304 = vld [vmem:[#allocation7 + $0xb8] sm:$0xff]
    %v305 = vld [vmem:[#allocation7 + $0xc0] sm:$0xff]
    %v306 = vld [vmem:[#allocation7 + $0xc8] sm:$0xff]
    %v307 = vld [vmem:[#allocation7 + $0xd0] sm:$0xff]
    %v308 = vld [vmem:[#allocation7 + $0xd8] sm:$0xff]
    %v309 = vld [vmem:[#allocation7 + $0xe0] sm:$0xff]
    %v310 = vld [vmem:[#allocation7 + $0xe8] sm:$0xff]
    %v311 = vld [vmem:[#allocation7 + $0xf0] sm:$0xff]
    %v312 = vld [vmem:[#allocation7 + $0xf8] sm:$0xff]
    %v313 = vld [vmem:[#allocation7 + $0x100] sm:$0xff]
    %v314 = vld [vmem:[#allocation7 + $0x108] sm:$0xff]
    %v315 = vld [vmem:[#allocation7 + $0x110] sm:$0xff]
    %v316 = vld [vmem:[#allocation7 + $0x118] sm:$0xff]
    %v317 = vld [vmem:[#allocation7 + $0x120] sm:$0xff]
    %v318 = vld [vmem:[#allocation7 + $0x128] sm:$0xff]
    %v319 = vld [vmem:[#allocation7 + $0x130] sm:$0xff]
    %v320 = vld [vmem:[#allocation7 + $0x138] sm:$0xff]
    %v321 = vld [vmem:[#allocation7 + $0x140] sm:$0xff]
    %v322 = vld [vmem:[#allocation7 + $0x148] sm:$0xff]
    %v323 = vld [vmem:[#allocation7 + $0x150] sm:$0xff]
    %v324 = vld [vmem:[#allocation7 + $0x158] sm:$0xff]
    %v325 = vld [vmem:[#allocation7 + $0x160] sm:$0xff]
    %v326 = vld [vmem:[#allocation7 + $0x168] sm:$0xff]
    %v327 = vld [vmem:[#allocation7 + $0x170] sm:$0xff]
    %v328 = vld [vmem:[#allocation7 + $0x178] sm:$0xff]
    %329 = vmatprep.subr.mxu0 %v282
    %330 = vmatpush1.msra.mxu0 %v281
    %331 = vmatprep.subr.mxu0 %v285
    %332 = vmatpush1.msra.mxu0 %v284
    %333 = vmatprep.subr.mxu0 %v288
    %334 = vmatpush1.msra.mxu0 %v287
    %335 = vmatprep.subr.mxu0 %v291
    %336 = vmatpush1.msra.mxu0 %v290
    %337 = vmatprep.subr.mxu0 %v294
    %338 = vmatpush1.msra.mxu0 %v293
    %339 = vmatprep.subr.mxu0 %v297
    %340 = vmatpush1.msra.mxu0 %v296
    %341 = vmatprep.subr.mxu0 %v300
    %342 = vmatpush1.msra.mxu0 %v299
    %343 = vmatprep.subr.mxu0 %v303
    %344 = vmatpush1.msra.mxu0 %v302
    %345 = vmatprep.subr.mxu0 %v306
    %346 = vmatpush1.msra.mxu0 %v305
    %347 = vmatprep.subr.mxu0 %v309
    %348 = vmatpush1.msra.mxu0 %v308
    %349 = vmatprep.subr.mxu0 %v312
    %350 = vmatpush1.msra.mxu0 %v311
    %351 = vmatprep.subr.mxu0 %v315
    %352 = vmatpush1.msra.mxu0 %v314
    %353 = vmatprep.subr.mxu0 %v318
    %354 = vmatpush1.msra.mxu0 %v317
    %355 = vmatprep.subr.mxu0 %v321
    %356 = vmatpush1.msra.mxu0 %v320
    %357 = vmatprep.subr.mxu0 %v324
    %358 = vmatpush1.msra.mxu0 %v323
    %359 = vmatprep.subr.mxu0 %v327
    %360 = vmatpush1.msra.mxu0 %v326
    %361 = vmatprep.subr.mxu0 0.0
    %362 = vmatpush1.msra.mxu0 0.0
    %363 = vmatprep.subr.mxu0 0.0
    %364 = vmatpush1.msra.mxu0 0.0
    %365 = vmatprep.subr.mxu0 0.0
    %366 = vmatpush1.msra.mxu0 0.0
    %367 = vmatprep.subr.mxu0 0.0
    %368 = vmatpush1.msra.mxu0 0.0
    %369 = vmatprep.subr.mxu0 0.0
    %370 = vmatpush1.msra.mxu0 0.0
    %371 = vmatprep.subr.mxu0 0.0
    %372 = vmatpush1.msra.mxu0 0.0
    %373 = vmatprep.subr.mxu0 0.0
    %374 = vmatpush1.msra.mxu0 0.0
    %375 = vmatprep.subr.mxu0 0.0
    %376 = vmatpush1.msra.mxu0 0.0
    %377 = vmatprep.subr.mxu0 0.0
    %378 = vmatpush1.msra.mxu0 0.0
    %379 = vmatprep.subr.mxu0 0.0
    %380 = vmatpush1.msra.mxu0 0.0
    %381 = vmatprep.subr.mxu0 0.0
    %382 = vmatpush1.msra.mxu0 0.0
    %383 = vmatprep.subr.mxu0 0.0
    %384 = vmatpush1.msra.mxu0 0.0
    %385 = vmatprep.subr.mxu0 0.0
    %386 = vmatpush1.msra.mxu0 0.0
    %387 = vmatprep.subr.mxu0 0.0
    %388 = vmatpush1.msra.mxu0 0.0
    %389 = vmatprep.subr.mxu0 0.0
    %390 = vmatpush1.msra.mxu0 0.0
    %391 = vmatprep.subr.mxu0 0.0
    %392 = vmatpush1.msra.mxu0 0.0
    %393 = vmatprep.mubr.f32.mxu0 0.0
    %394 = vmatmul.mubr.f32.gmra.mrb[0].mxu0 %v74
    %v395 = vpop.f32.mrb[0].mxu0
    %v396 = vadd.f32 0.0, %v395
    %v397 = vpop.f32.mrb[0].mxu0
    %v398 = vadd.f32 0.0, %v397
    %399 = vdwg.mxu0
    %400 = vmatprep.subr.mxu0 0.0
    %401 = vmatpush1.msra.mxu0 %v283
    %402 = vmatprep.subr.mxu0 0.0
    %403 = vmatpush1.msra.mxu0 %v286
    %404 = vmatprep.subr.mxu0 0.0
    %405 = vmatpush1.msra.mxu0 %v289
    %406 = vmatprep.subr.mxu0 0.0
    %407 = vmatpush1.msra.mxu0 %v292
    %408 = vmatprep.subr.mxu0 0.0
    %409 = vmatpush1.msra.mxu0 %v295
    %410 = vmatprep.subr.mxu0 0.0
    %411 = vmatpush1.msra.mxu0 %v298
    %412 = vmatprep.subr.mxu0 0.0
    %413 = vmatpush1.msra.mxu0 %v301
    %414 = vmatprep.subr.mxu0 0.0
    %415 = vmatpush1.msra.mxu0 %v304
    %416 = vmatprep.subr.mxu0 0.0
    %417 = vmatpush1.msra.mxu0 %v307
    %418 = vmatprep.subr.mxu0 0.0
    %419 = vmatpush1.msra.mxu0 %v310
    %420 = vmatprep.subr.mxu0 0.0
    %421 = vmatpush1.msra.mxu0 %v313
    %422 = vmatprep.subr.mxu0 0.0
    %423 = vmatpush1.msra.mxu0 %v316
    %424 = vmatprep.subr.mxu0 0.0
    %425 = vmatpush1.msra.mxu0 %v319
    %426 = vmatprep.subr.mxu0 0.0
    %427 = vmatpush1.msra.mxu0 %v322
    %428 = vmatprep.subr.mxu0 0.0
    %429 = vmatpush1.msra.mxu0 %v325
    %430 = vmatprep.subr.mxu0 0.0
    %431 = vmatpush1.msra.mxu0 %v328
    %432 = vmatprep.subr.mxu0 0.0
    %433 = vmatpush1.msra.mxu0 0.0
    %434 = vmatprep.subr.mxu0 0.0
    %435 = vmatpush1.msra.mxu0 0.0
    %436 = vmatprep.subr.mxu0 0.0
    %437 = vmatpush1.msra.mxu0 0.0
    %438 = vmatprep.subr.mxu0 0.0
    %439 = vmatpush1.msra.mxu0 0.0
    %440 = vmatprep.subr.mxu0 0.0
    %441 = vmatpush1.msra.mxu0 0.0
    %442 = vmatprep.subr.mxu0 0.0
    %443 = vmatpush1.msra.mxu0 0.0
    %444 = vmatprep.subr.mxu0 0.0
    %445 = vmatpush1.msra.mxu0 0.0
    %446 = vmatprep.subr.mxu0 0.0
    %447 = vmatpush1.msra.mxu0 0.0
    %448 = vmatprep.subr.mxu0 0.0
    %449 = vmatpush1.msra.mxu0 0.0
    %450 = vmatprep.subr.mxu0 0.0
    %451 = vmatpush1.msra.mxu0 0.0
    %452 = vmatprep.subr.mxu0 0.0
    %453 = vmatpush1.msra.mxu0 0.0
    %454 = vmatprep.subr.mxu0 0.0
    %455 = vmatpush1.msra.mxu0 0.0
    %456 = vmatprep.subr.mxu0 0.0
    %457 = vmatpush1.msra.mxu0 0.0
    %458 = vmatprep.subr.mxu0 0.0
    %459 = vmatpush1.msra.mxu0 0.0
    %460 = vmatprep.subr.mxu0 0.0
    %461 = vmatpush1.msra.mxu0 0.0
    %462 = vmatprep.subr.mxu0 0.0
    %463 = vmatpush1.msra.mxu0 0.0
    %464 = vmatprep.mubr.f32.mxu0 0.0
    %465 = vmatmul.mubr.f32.gmra.mrb[0].mxu0 %v74
    %v466 = vpop.f32.mrb[0].mxu0
    %v467 = vadd.f32 0.0, %v466
    %v468 = vpop.f32.mrb[0].mxu0
    %469 = vdwg.mxu0
    %v470 = vadd.f32 %v207, %v396
    %v471 = vxor.u32 %v470, 2147483648
    %v472 = vmul.f32 %v471, 1.442695
    %v473 = vpow.pop %v472
    %v474 = vadd.f32 %v473, 1.0
    %v475 = vrcp.pop %v474
    %v476 = vmul.f32 1.0, %v475
    %v477 = vadd.f32 %v209, %v398
    %v478 = vxor.u32 %v477, 2147483648
    %v479 = vmul.f32 %v478, 1.442695
    %v480 = vpow.pop %v479
    %v481 = vadd.f32 %v480, 1.0
    %v482 = vrcp.pop %v481
    %v483 = vmul.f32 1.0, %v482
    %v484 = vld [vmem:[%s6] sm:$0x1]
    %v485 = vadd.f32 %v467, %v484
    %v486 = vmul.f32 %v476, %v485
    %v487 = vadd.f32 %v278, %v486
    %v488 = vtanh.pop %v487
    %v489 = vsub.f32 1.0, %v483
    %v490 = vmul.f32 %v489, %v488
    %v491 = vmul.f32 %v483, %v74
    %v492 = vadd.f32 %v490, %v491
    %493 = vst [vmem:[#allocation2] sm:$0x1] %v492
    %494 = vst [vmem:[%s7] sm:$0x1] %v492
    // Predicated region
    $region38: #{_encode_impl.1} parent=1 // pred_check
      _
    $region39: #{_encode_impl.1} parent=1 // pred_check_branch
      %496 = sbr.rel (0) target = $region41
    $region40: #{_encode_impl.1} parent=1 // pred_region
      _
    $region41: #{_encode_impl.1} parent=1 // pred_fallthru
      _
    // Predicated region
    $region42: #{_encode_impl.1} parent=1 // pred_check
      _
    $region43: #{_encode_impl.1} parent=1 // pred_check_branch
      %498 = sbr.rel (0) target = $region45
    $region44: #{_encode_impl.1} parent=1 // pred_region
      _
    $region45: #{_encode_impl.1} parent=1 // pred_fallthru
      _
    %499 = vsyncpa [#allocation6], 1
    %500 = vsyncpa [#allocation8], 1

</llo_original>
